<compile_context>
chip_gen: v7x
topology: tpu7x:2x2x1
jax: 0.10.0
libtpu: 0.0.40
codegen_flags: <defaults>
</compile_context>

<pallas_src>
import functools
import math

import jax
import jax.numpy as jnp
from jax import lax
from jax.experimental import pallas as pl
from jax.experimental.pallas import tpu as pltpu


# ----------------------------------------------------------------------------
# Quaternion (Hamilton product) weight construction + padding helpers
# ----------------------------------------------------------------------------
def build_quaternion_weight(r_w, i_w, j_w, k_w):
    """r/i/j/k weights (out_ch, in_ch, ks) -> W (ks, 4*in_ch, 4*out_ch) such that
    out[t, co] = sum_{k, ci} x[t*stride + k*dil, ci] * W[k, ci, co]
    reproduces F.conv1d(x, cat_kernels_4_quaternion) from SpeechBrain."""
    row_r = jnp.concatenate([r_w, -i_w, -j_w, -k_w], axis=1)
    row_i = jnp.concatenate([i_w, r_w, -k_w, j_w], axis=1)
    row_j = jnp.concatenate([j_w, k_w, r_w, -i_w], axis=1)
    row_k = jnp.concatenate([k_w, -j_w, i_w, r_w], axis=1)
    W = jnp.concatenate([row_r, row_i, row_j, row_k], axis=0)  # (4O, 4I, ks)
    return jnp.transpose(W, (2, 1, 0))                         # (ks, 4I, 4O)


def get_padding_elem(L_in, stride, kernel_size, dilation):
    """Same as speechbrain.nnet.CNN.get_padding_elem."""
    if stride > 1:
        return [math.floor(kernel_size / 2), math.floor(kernel_size / 2)]
    L_out = (L_in - dilation * (kernel_size - 1) - 1) // stride + 1
    return [(L_in - L_out) // 2, (L_in - L_out) // 2]


def _round_up(x, m):
    return (x + m - 1) // m * m


# ----------------------------------------------------------------------------
# Pallas kernel: one (batch, time-tile) grid step
# ----------------------------------------------------------------------------
def _qconv1d_kernel(x_hbm, w_ref, b_ref, o_ref, xbuf, sem, *,
                    ks, dilation, tile_t, win_cols, n_t):
    # x_hbm : (B, C_rows, T_total)  raw HBM ref (pl.ANY), channels on sublanes
    # w_ref : (O4p, ks*C4p)         resident weights
    # b_ref : (O4p, 1)              bias
    # o_ref : (1, O4p, tile_t)      output tile, time on lanes
    # xbuf  : (2, C_rows, win_cols) VMEM double buffer for the input halo window
    b = pl.program_id(0)
    t = pl.program_id(1)
    slot = t % 2

    def issue(batch_idx, tile_idx, buf_slot):
        col0 = tile_idx * tile_t
        pltpu.make_async_copy(
            x_hbm.at[batch_idx, :, pl.ds(col0, win_cols)],
            xbuf.at[buf_slot],
            sem.at[buf_slot],
        ).start()

    # Prime the double buffer at the start of every batch row (chain stays
    # self-contained per batch row, so the batch axis can be megacore-parallel).
    @pl.when(t == 0)
    def _prime():
        issue(b, 0, 0)

    # Prefetch the next time tile of this batch row while computing this one.
    @pl.when(t + 1 < n_t)
    def _prefetch():
        issue(b, t + 1, 1 - slot)

    # Wait for this tile's input window.
    pltpu.make_async_copy(
        x_hbm.at[b, :, pl.ds(t * tile_t, win_cols)],
        xbuf.at[slot],
        sem.at[slot],
    ).wait()

    # Fuse all kernel taps into a single MXU matmul: stack the ks shifted tap
    # windows along the contraction (sublane) axis -> (ks*C4p, tile_t).
    if ks == 1:
        xcat = xbuf[slot, :, pl.ds(0, tile_t)]
    else:
        xcat = jnp.concatenate(
            [xbuf[slot, :, pl.ds(k * dilation, tile_t)] for k in range(ks)],
            axis=0,
        )

    acc = jnp.dot(w_ref[...], xcat, preferred_element_type=jnp.float32)
    o_ref[0] = (acc + b_ref[...]).astype(o_ref.dtype)


def _choose_tile_t(t_out, c_rows, kp, o4p, halo, in_itemsize, out_itemsize):
    """Largest lane-aligned time tile that comfortably fits the VMEM budget
    (budget derived for v7x's smaller VMEM; also fine on v5e/v6e)."""
    tile = min(512, _round_up(max(t_out, 1), 128))

    def footprint(tt):
        win = _round_up(tt + halo, 128)
        xb = 2 * c_rows * win * in_itemsize        # double-buffered input window
        wb = 2 * o4p * kp * in_itemsize            # resident weights (x2 to be safe)
        ob = 2 * o4p * tt * out_itemsize           # double-buffered output block
        tmp = (kp + 2 * o4p) * tt * 4              # xcat + f32 accumulator headroom
        return xb + wb + ob + tmp

    while tile > 128 and footprint(tile) > 20 * 1024 * 1024:
        tile //= 2
    return tile


# ----------------------------------------------------------------------------
# Wrapper: padding, layout plumbing, tiling, pallas_call
# ----------------------------------------------------------------------------
def qconv1d_forward(x, r_w, i_w, j_w, k_w, bias, *, stride=1, dilation=1,
                    padding="same", padding_mode="reflect", groups=1,
                    compute_dtype=None):
    """Forward pass matching QConv1d.forward (spinor=False).

    x     : (batch, time, 4*in_channels)  -- module's external convention
    r_w.. : (out_channels, in_channels, ks)
    bias  : (4*out_channels,)
    returns (batch, time_out, 4*out_channels)
    """
    if groups != 1:
        # TODO(synk): grouped quaternion convolution not implemented in the Pallas path.
        raise NotImplementedError("groups != 1 is not supported")

    B, T, C4 = x.shape
    ks = r_w.shape[-1]
    O4 = 4 * r_w.shape[0]
    out_dtype = x.dtype
    if compute_dtype is None:
        compute_dtype = x.dtype

    # --- time padding (identical to the SpeechBrain module) -------------------
    if padding == "same":
        pad_l, pad_r = get_padding_elem(T, stride, ks, dilation)
        x = jnp.pad(x, ((0, 0), (pad_l, pad_r), (0, 0)), mode=padding_mode)
    elif padding == "causal":
        x = jnp.pad(x, ((0, 0), ((ks - 1) * dilation, 0), (0, 0)))
    elif padding == "valid":
        pass
    else:
        raise ValueError("Padding must be 'same', 'valid' or 'causal'.")
    T_pad = x.shape[1]
    T_out = (T_pad - dilation * (ks - 1) - 1) // stride + 1

    # --- layout plumbing: channels -> sublanes, time -> lanes ------------------
    C4p = _round_up(C4, 8)
    O4p = _round_up(O4, 8)
    x_nct = jnp.transpose(x, (0, 2, 1))                       # (B, C4, T_pad)
    if C4p != C4:
        x_nct = jnp.pad(x_nct, ((0, 0), (0, C4p - C4), (0, 0)))

    W = build_quaternion_weight(r_w, i_w, j_w, k_w)           # (ks, C4, O4)
    W = jnp.pad(W, ((0, 0), (0, C4p - C4), (0, O4p - O4)))    # (ks, C4p, O4p)
    Kp = ks * C4p
    W2d = jnp.transpose(W, (2, 0, 1)).reshape(O4p, Kp)        # [co, k*C4p + ci]
    b2d = jnp.pad(bias, (0, O4p - O4)).reshape(O4p, 1).astype(jnp.float32)

    # --- stride > 1: decimate per tap in the wrapper (dense stride-1 kernel) ---
    if stride == 1:
        ks_eff, dil_eff, halo = ks, dilation, (ks - 1) * dilation
        x_dev = x_nct                                         # (B, C4p, T_pad)
        c_rows = C4p
    else:
        taps = [
            lax.slice(x_nct,
                      (0, 0, k * dilation),
                      (B, C4p, k * dilation + (T_out - 1) * stride + 1),
                      (1, 1, stride))
            for k in range(ks)
        ]
        x_dev = jnp.concatenate(taps, axis=1)                 # (B, ks*C4p, T_out)
        ks_eff, dil_eff, halo = 1, 1, 0
        c_rows = ks * C4p

    in_itemsize = jnp.dtype(compute_dtype).itemsize
    out_itemsize = jnp.dtype(out_dtype).itemsize
    tile_t = _choose_tile_t(T_out, c_rows, Kp, O4p, halo, in_itemsize, out_itemsize)
    n_t = pl.cdiv(T_out, tile_t)
    T_out_pad = n_t * tile_t
    win_cols = _round_up(tile_t + halo, 128)
    T_total = (n_t - 1) * tile_t + win_cols                   # every window in-bounds
    cur_T = x_dev.shape[2]
    if T_total > cur_T:
        x_dev = jnp.pad(x_dev, ((0, 0), (0, 0), (0, T_total - cur_T)))

    x_dev = x_dev.astype(compute_dtype)
    W2d = W2d.astype(compute_dtype)

    kernel = functools.partial(
        _qconv1d_kernel, ks=ks_eff, dilation=dil_eff,
        tile_t=tile_t, win_cols=win_cols, n_t=n_t,
    )

    cost = pl.CostEstimate(
        flops=2 * B * T_out * Kp * O4p,
        transcendentals=0,
        bytes_accessed=(B * c_rows * T_total * in_itemsize
                        + O4p * Kp * in_itemsize + O4p * 4
                        + B * O4p * T_out_pad * out_itemsize),
    )

    out_padded = pl.pallas_call(
        kernel,
        out_shape=jax.ShapeDtypeStruct((B, O4p, T_out_pad), out_dtype),
        grid_spec=pltpu.PrefetchScalarGridSpec(
            num_scalar_prefetch=0,
            grid=(B, n_t),
            in_specs=[
                pl.BlockSpec(memory_space=pl.ANY),            # x stays in HBM
                pl.BlockSpec((O4p, Kp), lambda b, t: (0, 0)), # resident weights
                pl.BlockSpec((O4p, 1), lambda b, t: (0, 0)),  # resident bias
            ],
            out_specs=pl.BlockSpec((1, O4p, tile_t), lambda b, t: (b, 0, t)),
            scratch_shapes=[
                pltpu.VMEM((2, c_rows, win_cols), compute_dtype),
                pltpu.SemaphoreType.DMA((2,)),
            ],
        ),
        compiler_params=pltpu.CompilerParams(
            dimension_semantics=("parallel", "arbitrary"),
            vmem_limit_bytes=32 * 1024 * 1024,
        ),
        cost_estimate=cost,
    )(x_dev, W2d, b2d)

    # Back to the module's (batch, time, channel) convention.
    return jnp.transpose(out_padded[:, :O4, :T_out], (0, 2, 1))


# ----------------------------------------------------------------------------
# Pure-JAX reference (sanity check of the quaternion conv semantics)
# ----------------------------------------------------------------------------
def qconv1d_reference(x, r_w, i_w, j_w, k_w, bias, *, stride=1, dilation=1,
                      padding="same", padding_mode="reflect"):
    B, T, C4 = x.shape
    ks = r_w.shape[-1]
    if padding == "same":
        pad_l, pad_r = get_padding_elem(T, stride, ks, dilation)
        x = jnp.pad(x, ((0, 0), (pad_l, pad_r), (0, 0)), mode=padding_mode)
    elif padding == "causal":
        x = jnp.pad(x, ((0, 0), ((ks - 1) * dilation, 0), (0, 0)))
    W = build_quaternion_weight(r_w, i_w, j_w, k_w)  # (ks, C4, O4)
    out = lax.conv_general_dilated(
        x, W,
        window_strides=(stride,),
        padding="VALID",
        rhs_dilation=(dilation,),
        dimension_numbers=("NWC", "WIO", "NWC"),
    )
    return out + bias[None, None, :]


# ----------------------------------------------------------------------------
# Main
# ----------------------------------------------------------------------------
if __name__ == "__main__":
    # Small shapes consistent with QConv1d: input (batch, time, channel) with
    # channel % 4 == 0 -> in_channels = channel // 4; out dim = 4*out_channels.
    batch, time, channel = 2, 16, 8
    out_channels, in_channels, ks = 3, channel // 4, 3

    key = jax.random.PRNGKey(0)
    kx, kr, ki, kj, kk, kx2 = jax.random.split(key, 6)

    x = jax.random.uniform(kx, (batch, time, channel), dtype=jnp.float32)

    # Deterministic glorot-style stand-in for quaternion_init/affect_conv_init
    # (initialization only; forward math is unchanged).
    fan_in = in_channels * ks
    fan_out = out_channels * ks
    sigma = 1.0 / math.sqrt(2.0 * (fan_in + fan_out))
    w_shape = (out_channels, in_channels, ks)
    r_w = sigma * jax.random.normal(kr, w_shape, dtype=jnp.float32)
    i_w = sigma * jax.random.normal(ki, w_shape, dtype=jnp.float32)
    j_w = sigma * jax.random.normal(kj, w_shape, dtype=jnp.float32)
    k_w = sigma * jax.random.normal(kk, w_shape, dtype=jnp.float32)
    bias = jnp.zeros((4 * out_channels,), dtype=jnp.float32)  # module fills bias with 0

    # --- 1) module defaults: f32, stride=1, padding='same' (reflect) -----------
    out = qconv1d_forward(x, r_w, i_w, j_w, k_w, bias,
                          stride=1, dilation=1, padding="same",
                          padding_mode="reflect")
    out = jax.block_until_ready(out)
    ref = qconv1d_reference(x, r_w, i_w, j_w, k_w, bias,
                            stride=1, dilation=1, padding="same",
                            padding_mode="reflect")
    ref = jax.block_until_ready(ref)
    assert out.shape == (batch, time, 4 * out_channels), out.shape
    assert jnp.allclose(out, ref, rtol=2e-3, atol=2e-3), float(
        jnp.max(jnp.abs(out - ref)))

    # --- 2) bf16 operands (v6e/v7x MXU fast path), f32 accumulation -------------
    out_bf16 = qconv1d_forward(x, r_w, i_w, j_w, k_w, bias,
                               stride=1, dilation=1, padding="same",
                               padding_mode="reflect",
                               compute_dtype=jnp.bfloat16)
    out_bf16 = jax.block_until_ready(out_bf16)
    assert out_bf16.shape == (batch, time, 4 * out_channels), out_bf16.shape
    assert jnp.allclose(out_bf16, ref, rtol=3e-2, atol=3e-2), float(
        jnp.max(jnp.abs(out_bf16 - ref)))

    # --- 3) stride=2 (wrapper-side tap decimation path) -------------------------
    out_s2 = qconv1d_forward(x, r_w, i_w, j_w, k_w, bias,
                             stride=2, dilation=1, padding="same",
                             padding_mode="reflect")
    out_s2 = jax.block_until_ready(out_s2)
    ref_s2 = qconv1d_reference(x, r_w, i_w, j_w, k_w, bias,
                               stride=2, dilation=1, padding="same",
                               padding_mode="reflect")
    assert out_s2.shape == ref_s2.shape, (out_s2.shape, ref_s2.shape)
    assert jnp.allclose(out_s2, ref_s2, rtol=2e-3, atol=2e-3), float(
        jnp.max(jnp.abs(out_s2 - ref_s2)))

    # --- 4) longer sequence: exercises multi-tile grid + double-buffered DMA ----
    time_long = 1040
    x_long = jax.random.uniform(kx2, (batch, time_long, channel), dtype=jnp.float32)
    out_long = qconv1d_forward(x_long, r_w, i_w, j_w, k_w, bias,
                               stride=1, dilation=1, padding="same",
                               padding_mode="reflect")
    out_long = jax.block_until_ready(out_long)
    ref_long = qconv1d_reference(x_long, r_w, i_w, j_w, k_w, bias,
                                 stride=1, dilation=1, padding="same",
                                 padding_mode="reflect")
    assert out_long.shape == (batch, time_long, 4 * out_channels), out_long.shape
    assert jnp.allclose(out_long, ref_long, rtol=2e-3, atol=2e-3), float(
        jnp.max(jnp.abs(out_long - ref_long)))

    print("KERNEL_OK")
</pallas_src>

<mosaic_0001>
module attributes {stable_mosaic.version = 11 : i64} {
  func.func @_qconv1d_kernel(%arg0: i32, %arg1: i32, %arg2: memref<2x8x256xf32, #tpu.memory_space<any>>, %arg3: memref<16x24xf32, #tpu.memory_space<vmem>>, %arg4: memref<16x1xf32, #tpu.memory_space<vmem>>, %arg5: memref<1x16x128xf32, #tpu.memory_space<vmem>>, %arg6: memref<2x8x256xf32, #tpu.memory_space<vmem>>, %arg7: memref<2x!tpu.dma_semaphore, #tpu.memory_space<semaphore_mem>>) attributes {dimension_semantics = [#tpu.dimension_semantics<parallel>, #tpu.dimension_semantics<arbitrary>], iteration_bounds = array<i64: 2, 1>, scalar_prefetch = 0 : i64, scratch_operands = 2 : i64, tpu.core_type = #tpu.core_type<tc>, window_params = [{}, {pipeline_mode = #tpu.pipeline_mode<synchronous>, transform_indices = @transform_1, window_bounds = array<i64: 16, 24>}, {pipeline_mode = #tpu.pipeline_mode<synchronous>, transform_indices = @transform_2, window_bounds = array<i64: 16, 1>}, {transform_indices = @transform_3, window_bounds = array<i64: 1, 16, 128>}]} {
    %c2_i32 = arith.constant 2 : i32
    %c0_i32 = arith.constant 0 : i32
    %0 = arith.cmpi eq, %c2_i32, %c0_i32 : i32
    %c1_i32 = arith.constant 1 : i32
    %1 = arith.select %0, %c1_i32, %c2_i32 : i32
    %2 = arith.remsi %arg1, %1 : i32
    %c0_i32_0 = arith.constant 0 : i32
    %3 = arith.cmpi ne, %2, %c0_i32_0 : i32
    %c0_i32_1 = arith.constant 0 : i32
    %4 = arith.cmpi slt, %2, %c0_i32_1 : i32
    %c0_i32_2 = arith.constant 0 : i32
    %5 = arith.cmpi slt, %1, %c0_i32_2 : i32
    %6 = arith.xori %4, %5 : i1
    %7 = arith.andi %6, %3 : i1
    %8 = arith.addi %2, %1 : i32
    %9 = arith.select %7, %8, %2 : i32
    %c0_i32_3 = arith.constant 0 : i32
    %10 = arith.cmpi eq, %arg1, %c0_i32_3 : i32
    %11 = arith.extui %10 : i1 to i32
    %c0_i32_4 = arith.constant 0 : i32
    %12 = arith.cmpi ne, %11, %c0_i32_4 : i32
    scf.if %12 {
      %c0_i32_21 = arith.constant 0 : i32
      %c0_i32_22 = arith.constant 0 : i32
      %c0_i32_23 = arith.constant 0 : i32
      %c0_i32_24 = arith.constant 0 : i32
      %42 = tpu.memref_slice %arg2[%arg0, %c0_i32_23, %c0_i32_24] : memref<2x8x256xf32, #tpu.memory_space<any>> -> memref<1x8x256xf32, #tpu.memory_space<any>>
      %43 = tpu.memref_squeeze %42 : memref<1x8x256xf32, #tpu.memory_space<any>> -> memref<8x256xf32, #tpu.memory_space<any>>
      %c0_i32_25 = arith.constant 0 : i32
      %c0_i32_26 = arith.constant 0 : i32
      %44 = tpu.memref_slice %arg6[%c0_i32_21, %c0_i32_25, %c0_i32_26] : memref<2x8x256xf32, #tpu.memory_space<vmem>> -> memref<1x8x256xf32, #tpu.memory_space<vmem>>
      %45 = tpu.memref_squeeze %44 : memref<1x8x256xf32, #tpu.memory_space<vmem>> -> memref<8x256xf32, #tpu.memory_space<vmem>>
      %46 = tpu.memref_slice %arg7[%c0_i32_22] : memref<2x!tpu.dma_semaphore, #tpu.memory_space<semaphore_mem>> -> memref<1x!tpu.dma_semaphore, #tpu.memory_space<semaphore_mem>>
      %47 = tpu.memref_squeeze %46 : memref<1x!tpu.dma_semaphore, #tpu.memory_space<semaphore_mem>> -> memref<!tpu.dma_semaphore, #tpu.memory_space<semaphore_mem>>
      tpu.enqueue_dma source(%43 : memref<8x256xf32, #tpu.memory_space<any>>) target(%45 : memref<8x256xf32, #tpu.memory_space<vmem>>) target_semaphore(%47 : memref<!tpu.dma_semaphore, #tpu.memory_space<semaphore_mem>>)
    } else {
    }
    %c1_i32_5 = arith.constant 1 : i32
    %13 = arith.addi %arg1, %c1_i32_5 : i32
    %c1_i32_6 = arith.constant 1 : i32
    %14 = arith.cmpi slt, %13, %c1_i32_6 : i32
    %15 = arith.extui %14 : i1 to i32
    %c0_i32_7 = arith.constant 0 : i32
    %16 = arith.cmpi ne, %15, %c0_i32_7 : i32
    scf.if %16 {
      %c1_i32_21 = arith.constant 1 : i32
      %42 = arith.addi %arg1, %c1_i32_21 : i32
      %c1_i32_22 = arith.constant 1 : i32
      %43 = arith.subi %c1_i32_22, %9 : i32
      %c128_i32_23 = arith.constant 128 : i32
      %44 = arith.muli %42, %c128_i32_23 : i32
      %c0_i32_24 = arith.constant 0 : i32
      %45 = tpu.memref_slice %arg2[%arg0, %c0_i32_24, %44] : memref<2x8x256xf32, #tpu.memory_space<any>> -> memref<1x8x256xf32, #tpu.memory_space<any>>
      %46 = tpu.memref_squeeze %45 : memref<1x8x256xf32, #tpu.memory_space<any>> -> memref<8x256xf32, #tpu.memory_space<any>>
      %c0_i32_25 = arith.constant 0 : i32
      %c0_i32_26 = arith.constant 0 : i32
      %47 = tpu.memref_slice %arg6[%43, %c0_i32_25, %c0_i32_26] : memref<2x8x256xf32, #tpu.memory_space<vmem>> -> memref<1x8x256xf32, #tpu.memory_space<vmem>>
      %48 = tpu.memref_squeeze %47 : memref<1x8x256xf32, #tpu.memory_space<vmem>> -> memref<8x256xf32, #tpu.memory_space<vmem>>
      %49 = tpu.memref_slice %arg7[%43] : memref<2x!tpu.dma_semaphore, #tpu.memory_space<semaphore_mem>> -> memref<1x!tpu.dma_semaphore, #tpu.memory_space<semaphore_mem>>
      %50 = tpu.memref_squeeze %49 : memref<1x!tpu.dma_semaphore, #tpu.memory_space<semaphore_mem>> -> memref<!tpu.dma_semaphore, #tpu.memory_space<semaphore_mem>>
      tpu.enqueue_dma source(%46 : memref<8x256xf32, #tpu.memory_space<any>>) target(%48 : memref<8x256xf32, #tpu.memory_space<vmem>>) target_semaphore(%50 : memref<!tpu.dma_semaphore, #tpu.memory_space<semaphore_mem>>)
    } else {
    }
    %c128_i32 = arith.constant 128 : i32
    %17 = arith.muli %arg1, %c128_i32 : i32
    %c0_i32_8 = arith.constant 0 : i32
    %18 = tpu.memref_slice %arg2[%arg0, %c0_i32_8, %17] : memref<2x8x256xf32, #tpu.memory_space<any>> -> memref<1x8x256xf32, #tpu.memory_space<any>>
    %19 = tpu.memref_squeeze %18 : memref<1x8x256xf32, #tpu.memory_space<any>> -> memref<8x256xf32, #tpu.memory_space<any>>
    %c0_i32_9 = arith.constant 0 : i32
    %c0_i32_10 = arith.constant 0 : i32
    %20 = tpu.memref_slice %arg6[%9, %c0_i32_9, %c0_i32_10] : memref<2x8x256xf32, #tpu.memory_space<vmem>> -> memref<1x8x256xf32, #tpu.memory_space<vmem>>
    %21 = tpu.memref_squeeze %20 : memref<1x8x256xf32, #tpu.memory_space<vmem>> -> memref<8x256xf32, #tpu.memory_space<vmem>>
    %22 = tpu.memref_slice %arg7[%9] : memref<2x!tpu.dma_semaphore, #tpu.memory_space<semaphore_mem>> -> memref<1x!tpu.dma_semaphore, #tpu.memory_space<semaphore_mem>>
    %23 = tpu.memref_squeeze %22 : memref<1x!tpu.dma_semaphore, #tpu.memory_space<semaphore_mem>> -> memref<!tpu.dma_semaphore, #tpu.memory_space<semaphore_mem>>
    tpu.wait_dma2 semaphore(%23 : memref<!tpu.dma_semaphore, #tpu.memory_space<semaphore_mem>>) src(%19 : memref<8x256xf32, #tpu.memory_space<any>>) dst(%21 : memref<8x256xf32, #tpu.memory_space<vmem>>)
    %24 = arith.index_cast %9 : i32 to index
    %c0 = arith.constant 0 : index
    %c0_11 = arith.constant 0 : index
    %25 = vector.load %arg6[%24, %c0, %c0_11] : memref<2x8x256xf32, #tpu.memory_space<vmem>>, vector<1x8x128xf32>
    %26 = vector.shape_cast %25 : vector<1x8x128xf32> to vector<8x128xf32>
    %27 = arith.index_cast %9 : i32 to index
    %c0_12 = arith.constant 0 : index
    %c1 = arith.constant 1 : index
    %28 = vector.load %arg6[%27, %c0_12, %c1] : memref<2x8x256xf32, #tpu.memory_space<vmem>>, vector<1x8x128xf32>
    %29 = vector.shape_cast %28 : vector<1x8x128xf32> to vector<8x128xf32>
    %30 = arith.index_cast %9 : i32 to index
    %c0_13 = arith.constant 0 : index
    %c2 = arith.constant 2 : index
    %31 = vector.load %arg6[%30, %c0_13, %c2] : memref<2x8x256xf32, #tpu.memory_space<vmem>>, vector<1x8x128xf32>
    %32 = vector.shape_cast %31 : vector<1x8x128xf32> to vector<8x128xf32>
    %33 = tpu.concatenate %26, %29, %32 in 0 : vector<8x128xf32>, vector<8x128xf32>, vector<8x128xf32> -> vector<24x128xf32>
    %c0_14 = arith.constant 0 : index
    %c0_15 = arith.constant 0 : index
    %34 = vector.load %arg3[%c0_14, %c0_15] : memref<16x24xf32, #tpu.memory_space<vmem>>, vector<16x24xf32>
    %cst = arith.constant dense<0.000000e+00> : vector<16x128xf32>
    %35 = tpu.matmul %34, %33, %cst {dimension_numbers = #tpu.dot_dimension_numbers<[1], [0], [0], [1], [0, 0, 1, 1], [], []>} : vector<16x24xf32>, vector<24x128xf32>, vector<16x128xf32> -> vector<16x128xf32>
    %c0_16 = arith.constant 0 : index
    %c0_17 = arith.constant 0 : index
    %36 = vector.load %arg4[%c0_16, %c0_17] : memref<16x1xf32, #tpu.memory_space<vmem>>, vector<16x1xf32>
    %37 = vector.broadcast %36 : vector<16x1xf32> to vector<16x128xf32>
    %38 = arith.addf %35, %37 : vector<16x128xf32>
    %c0_18 = arith.constant 0 : index
    %c0_19 = arith.constant 0 : index
    %c0_20 = arith.constant 0 : index
    %39 = vector.load %arg5[%c0_18, %c0_19, %c0_20] : memref<1x16x128xf32, #tpu.memory_space<vmem>>, vector<1x16x128xf32>
    %40 = vector.shape_cast %39 : vector<1x16x128xf32> to vector<16x128xf32>
    %41 = vector.shape_cast %38 : vector<16x128xf32> to vector<1x16x128xf32>
    tpu.vector_store %arg5[%c0_18, %c0_19, %c0_20], %41 {strides = array<i32>} : memref<1x16x128xf32, #tpu.memory_space<vmem>>, vector<1x16x128xf32>,
    return
  }
  func.func @transform_1(%arg0: i32, %arg1: i32) -> (i32, i32) {
    %c0_i32 = arith.constant 0 : i32
    %c0_i32_0 = arith.constant 0 : i32
    %c0_i32_1 = arith.constant 0 : i32
    return %c0_i32, %c0_i32_0 : i32, i32
  }
  func.func @transform_2(%arg0: i32, %arg1: i32) -> (i32, i32) {
    %c0_i32 = arith.constant 0 : i32
    %c0_i32_0 = arith.constant 0 : i32
    %c0_i32_1 = arith.constant 0 : i32
    return %c0_i32, %c0_i32_0 : i32, i32
  }
  func.func @transform_3(%arg0: i32, %arg1: i32) -> (i32, i32, i32) {
    %c0_i32 = arith.constant 0 : i32
    %c0_i32_0 = arith.constant 0 : i32
    return %arg0, %c0_i32, %arg1 : i32, i32, i32
  }
}

</mosaic_0001>

<llo_original>
// kernel: tpu_custom_call.1
$region0: #{tpu_custom_call.1}
  #allocation0 [shape = 'u32[]', space=smem, size = 0x4, offset = 0x4, fixed_abs, tag = 'smem constant byte address 0x4 - core index']
  #allocation1 [shape = 'u32[144,128]{1,0:T(1,128)}', space=vmem, size = 0x12000, scoped, tag = 'internal scratch']
  #allocation2 [shape = 'f32[2,8,256]{2,1,0:T(8,128)}', space=vmem, size = 0x4000, scoped, tag = 'scratch operand']
  #allocation3 [shape = 's32[2]{0}', space=sflag, size = 0x8, scoped, tag = 'scratch operand']
  #allocation6 [shape = 's32[]', space=sflag, size = 0x4, offset = 0, fixed_abs, tag = 'sflag constant byte address 0x0 - dummy sync flag']
  #allocation7 [shape = 's32[]', space=sflag, size = 0x4, offset = 0, fixed_abs, tag = 'sflag constant byte address 0x0 - dummy sync flag']
  #allocation8 [shape = 'u32[]', space=smem, size = 0x4, offset = 0x44, fixed_abs, tag = 'smem constant byte address 0x44 - assertion arg 0']
  #allocation9 [shape = 'u32[]', space=smem, size = 0x4, offset = 0x48, fixed_abs, tag = 'smem constant byte address 0x48 - assertion arg 1']
  #allocation10 [shape = 's32[]', space=sflag, size = 0x4, offset = 0, fixed_abs, tag = 'sflag constant byte address 0x0 - dummy sync flag']
  #allocation11 [shape = 's32[]', space=sflag, size = 0x4, offset = 0, fixed_abs, tag = 'sflag constant byte address 0x0 - dummy sync flag']
  %s0 = inlined_call_operand.hbm [shape: f32[2,8,256], index: 0, kind: input, shape index: {}]
  %s1 = inlined_call_operand.vmem [shape: f32[16,24], index: 1, kind: input, shape index: {}]
  %s2 = inlined_call_operand.vmem [shape: f32[16,1], index: 2, kind: input, shape index: {}]
  %s3 = inlined_call_operand.hbm [shape: f32[2,16,128], index: 3, kind: output, shape index: {}]
  %s4 = sld [smem:[#allocation0]]
  $region57: #{tpu_custom_call.1} parent=0
    _
  %s6 = ssub.s32 1, %s4
  %s7 = scalar_select 0, %s6, %s4
  $region1: #{tpu_custom_call.1} parent=0
    #allocation4 [shape = 'u8[16384]{0}', space=vmem, size = 0x4000, scoped, tag = 'output window, operand 0']
    #allocation5 [shape = 's32[2]{0}', space=sflag, size = 0x8, scoped, tag = 'scoped memory for tpu_custom_call.1']
    %8 = vsyncpa [#allocation5], 0
    %s9 = scalar_lea.sflag [#allocation5], 1
    %10 = vsyncpa %s9, 0
    loop: start=0, step=1, limit=4
    $region2: #{tpu_custom_call.1} parent=1 // loop_pre_header
      _
    $region3: #{tpu_custom_call.1} parent=1 // loop_header
      %s12 = sphi 0, %s16
      %p13 = scmp.ge.s32.totalorder %s12, 4
      %s19 = sphi 0, %s31
      %s20 = sphi 0, %s27
      %s21 = sphi 0, %s19
      %s22 = sphi 0, %s20
      %s23 = sphi 0, %s21
      %s24 = sphi 0, %s22
      %s32 = sphi 0, %s32
      %s34 = sphi 0, %s32
      %s35 = sphi 0, %s34
      %s49 = sphi 0, %s35
      %s53 = sphi 0, %s53
      %s55 = sphi 0, %s53
      %s56 = sphi 0, %s55
      %s70 = sphi 0, %s56
      %s78 = sphi 0, %s80
      %s81 = sphi 0, %s78
      %s82 = sphi 0, %s81
      %s98 = sphi 0, %s82
    $region4: #{tpu_custom_call.1} parent=1 // loop_header_branch
      %15 = sbr.rel (%p13) target = $region8
    $region5: #{tpu_custom_call.1} parent=1 // loop_body
      %s17 = ssub.s32 %s12, 1
      %s18 = ssub.s32 %s12, 2
      %s25 = sadd.s32 1, %s20
      %p26 = scmp.ge.s32.totalorder %s25, 1
      %s27 = scalar_select %p26, 0, %s25
      %s28 = sadd.s32 1, %s19
      %s29 = scalar_select %p26, %s28, %s19
      %p30 = scmp.ge.s32.totalorder %s29, 2
      %s31 = scalar_select %p30, 0, %s29
      %s33 = sadd.s32 %s32, 1
      %p36 = scmp.eq.s32.totalorder %s12, 1
      %p37 = scmp.ne.s32.totalorder %s32, %s34
      %p38 = scmp.eq.s32.totalorder %s12, 0
      %p39 = por %p37, %p38
      %p40 = scmp.ne.s32.totalorder %s32, %s34
      %p41 = scmp.eq.s32.totalorder %s17, 1
      %p42 = por %p40, %p41
      %p43 = scmp.ne.s32.totalorder %s34, %s35
      %p44 = scmp.eq.s32.totalorder %s17, 0
      %p45 = por %p43, %p44
      %p46 = scmp.ne.s32.totalorder %s34, %s35
      %p47 = scmp.eq.s32.totalorder %s18, 1
      %p48 = por %p46, %p47
      %p50 = scmp.ne.s32.totalorder %s35, %s49
      %p51 = scmp.eq.s32.totalorder %s18, 0
      %p52 = por %p50, %p51
      %s54 = sadd.s32 %s53, 1
      %p57 = scmp.eq.s32.totalorder %s12, 1
      %p58 = scmp.ne.s32.totalorder %s53, %s55
      %p59 = scmp.eq.s32.totalorder %s12, 0
      %p60 = por %p58, %p59
      %p61 = scmp.ne.s32.totalorder %s53, %s55
      %p62 = scmp.eq.s32.totalorder %s17, 1
      %p63 = por %p61, %p62
      %p64 = scmp.ne.s32.totalorder %s55, %s56
      %p65 = scmp.eq.s32.totalorder %s17, 0
      %p66 = por %p64, %p65
      %p67 = scmp.ne.s32.totalorder %s55, %s56
      %p68 = scmp.eq.s32.totalorder %s18, 1
      %p69 = por %p67, %p68
      %p71 = scmp.ne.s32.totalorder %s56, %s70
      %p72 = scmp.eq.s32.totalorder %s18, 0
      %p73 = por %p71, %p72
      %s74 = ssub.s32 %s19, %s31
      %s75 = ssub.s32 %s20, %s27
      %s76 = sor.u32 %s74, %s75
      %p77 = scmp.eq.s32.totalorder %s76, 0
      %s79 = sadd.s32 %s78, 1
      %s80 = scalar_select %p77, %s78, %s79
      %p83 = pneg %p77
      %p84 = scmp.eq.s32.totalorder %s12, 1
      %p85 = por %p83, %p84
      %p86 = scmp.ne.s32.totalorder %s78, %s81
      %p87 = scmp.eq.s32.totalorder %s12, 0
      %p88 = por %p86, %p87
      %p89 = scmp.ne.s32.totalorder %s78, %s81
      %p90 = scmp.eq.s32.totalorder %s17, 1
      %p91 = por %p89, %p90
      %p92 = scmp.ne.s32.totalorder %s81, %s82
      %p93 = scmp.eq.s32.totalorder %s17, 0
      %p94 = por %p92, %p93
      %p95 = scmp.ne.s32.totalorder %s81, %s82
      %p96 = scmp.eq.s32.totalorder %s18, 1
      %p97 = por %p95, %p96
      %p99 = scmp.ne.s32.totalorder %s82, %s98
      %p100 = scmp.eq.s32.totalorder %s18, 0
      %p101 = por %p99, %p100
      %p102 = scmp.le.s32.totalorder 1, %s12
      %p103 = scmp.lt.s32.totalorder %s12, 3
      %p104 = pnand %p102, %p103
      %p105 = pneg %p104
      // Predicated region
      $region9: #{tpu_custom_call.1} parent=5 // pred_check
        _
      $region10: #{tpu_custom_call.1} parent=5 // pred_check_branch
        %107 = sbr.rel (%p104) target = $region12
      $region11: #{tpu_custom_call.1} parent=5 // pred_region
        %s108 = ssub.s32 %s12, 1
        // Predicated region
        $region13: #{tpu_custom_call.1} parent=11 // pred_check
          %p109 = pneg %p45
        $region14: #{tpu_custom_call.1} parent=11 // pred_check_branch
          %111 = sbr.rel (%p109) target = $region16
        $region15: #{tpu_custom_call.1} parent=11 // pred_region
          _
        $region16: #{tpu_custom_call.1} parent=11 // pred_fallthru
          _
        // Predicated region
        $region17: #{tpu_custom_call.1} parent=11 // pred_check
          %p112 = pneg %p66
        $region18: #{tpu_custom_call.1} parent=11 // pred_check_branch
          %114 = sbr.rel (%p112) target = $region20
        $region19: #{tpu_custom_call.1} parent=11 // pred_region
          _
        $region20: #{tpu_custom_call.1} parent=11 // pred_fallthru
          _
      $region12: #{tpu_custom_call.1} parent=5 // pred_fallthru
        _
      %p115 = scmp.lt.s32.totalorder %s12, 2
      // Predicated region
      $region21: #{tpu_custom_call.1} parent=5 // pred_check
        %p116 = pneg %p115
      $region22: #{tpu_custom_call.1} parent=5 // pred_check_branch
        %118 = sbr.rel (%p116) target = $region24
      $region23: #{tpu_custom_call.1} parent=5 // pred_region
        _
      $region24: #{tpu_custom_call.1} parent=5 // pred_fallthru
        _
      %p119 = scmp.le.s32.totalorder 1, %s12
      %p120 = scmp.lt.s32.totalorder %s12, 3
      %p121 = pnand %p119, %p120
      %p122 = pneg %p121
      // Predicated region
      $region25: #{tpu_custom_call.1} parent=5 // pred_check
        _
      $region26: #{tpu_custom_call.1} parent=5 // pred_check_branch
        %124 = sbr.rel (%p121) target = $region28
      $region27: #{tpu_custom_call.1} parent=5 // pred_region
        %s125 = ssub.s32 %s12, 1
        %p126 = pneg %p45
        %p127 = pneg %p42
        %p128 = pneg %p66
        %p129 = pneg %p63
        %p130 = pneg %p94
        %p131 = pneg %p91
        %s132 = sand.u32 %s81, 1
        %s133 = scalar_lea.sflag [#allocation5], %s132
        %s134 = sand.u32 %s81, 1
        %s135 = smul.addr %s134, 16
        %s136 = scalar_lea.vmem [#allocation4], %s135
        %p137 = scmp.lt.s32.totalorder %s22, 0
        %s138 = ssub.s32 0, %s22
        %s139 = scalar_select %p137, %s138, %s22
        %s140 = sand.u32 %s139, 1
        %s141 = ssub.s32 0, %s140
        %s142 = scalar_select %p137, %s141, %s140
        %p143 = scmp.ne.s32.totalorder %s142, 0
        %p144 = scmp.lt.s32.totalorder %s142, 0
        %p145 = pnand %p144, %p143
        %p146 = pneg %p145
        %s147 = sadd.s32 %s142, 2
        %s148 = scalar_select %p146, %s147, %s142
        %p149 = scmp.eq.s32.totalorder %s22, 0
        // Predicated region
        $region29: #{tpu_custom_call.1} parent=27 // pred_check
          %p150 = pneg %p149
        $region30: #{tpu_custom_call.1} parent=27 // pred_check_branch
          %152 = sbr.rel (%p150) target = $region32
        $region31: #{tpu_custom_call.1} parent=27 // pred_region
          %s153 = smul.u32 %s21, 2
          %s154 = smul.addr %s153, 128
          %s155 = scalar_lea.hbm %s0, %s154
          // Predicated region
          $region33: #{tpu_custom_call.1} parent=31 // pred_check
            _
          $region34: #{tpu_custom_call.1} parent=31 // pred_check_branch
            %157 = sbr.rel target = $region36
          $region35: #{tpu_custom_call.1} parent=31 // pred_region
            %158 = sst [smem:[#allocation8]] [#allocation7]
            %159 = sst [smem:[#allocation9]] [#allocation6]
          $region36: #{tpu_custom_call.1} parent=31 // pred_fallthru
            _
          %161 = shalt.err (0)
          %s163 = sshll.u32 [#allocation2], 4
          %s164 = int_to_ptr.vmem [resolvable:$true] %s163
          %166 = dma.hbm_to_vmem [thread:$0]  %s155, 256, %s164, [#allocation3]
        $region32: #{tpu_custom_call.1} parent=27 // pred_fallthru
          _
        %s167 = sadd.s32 %s22, 1
        %p168 = scmp.lt.s32.totalorder %s167, 1
        // Predicated region
        $region37: #{tpu_custom_call.1} parent=27 // pred_check
          %p169 = pneg %p168
        $region38: #{tpu_custom_call.1} parent=27 // pred_check_branch
          %171 = sbr.rel (%p169) target = $region40
        $region39: #{tpu_custom_call.1} parent=27 // pred_region
          %s172 = ssub.s32 1, %s148
          %s173 = smul.u32 %s167, 128
          %s174 = sshra.s32 %s173, 7
          %s175 = sand.u32 %s173, 127
          %s176 = smul.u32 %s21, 2
          %s177 = sadd.s32 %s174, %s176
          %s178 = smul.addr %s177, 128
          %s179 = scalar_lea.hbm %s0, %s178
          %s180 = smul.u32 %s172, 2
          %s181 = smul.addr %s180, 8
          %s182 = scalar_lea.vmem [#allocation2], %s181
          %s183 = scalar_lea.sflag [#allocation3], %s172
          // Predicated region
          $region41: #{tpu_custom_call.1} parent=39 // pred_check
            _
          $region42: #{tpu_custom_call.1} parent=39 // pred_check_branch
            %185 = sbr.rel target = $region44
          $region43: #{tpu_custom_call.1} parent=39 // pred_region
            %186 = sst [smem:[#allocation8]] [#allocation11]
            %187 = sst [smem:[#allocation9]] [#allocation10]
          $region44: #{tpu_custom_call.1} parent=39 // pred_fallthru
            _
          %189 = shalt.err (0)
          %s191 = sshll.u32 %s182, 4
          %s192 = int_to_ptr.vmem [resolvable:$true] %s191
          %194 = dma.hbm_to_vmem [thread:$0]  %s179, 256, %s192, %s183
        $region40: #{tpu_custom_call.1} parent=27 // pred_fallthru
          _
        %s195 = smul.u32 %s148, 2
        %s196 = smul.addr %s195, 8
        %s197 = scalar_lea.vmem [#allocation2], %s196
        %s198 = scalar_lea.sflag [#allocation3], %s148
        %s199 = smul.u32 8, 1
        %s200 = smul.u32 %s199, 2
        %s201 = sshll.u32 %s200, 4
        %202 = dma.done %s198, %s201
        %v203 = vld [vmem:[%s197] sm:$0xff]
        %v204 = vld [vmem:[%s197 + $0x8] sm:$0xff]
        %207 = vrot.lane.b32.xlu0 %v203, 127
        %v208 = vpop.permute.xlu0 %207
        %209 = vrot.lane.b32.xlu0 %v204, 127
        %v210 = vpop.permute.xlu0 %209
        %vm211 = vcmask 1039360
        %v212 = vsel %vm211, %v208, %v210
        %214 = vrot.lane.b32.xlu0 %v203, 126
        %v215 = vpop.permute.xlu0 %214
        %216 = vrot.lane.b32.xlu0 %v204, 126
        %v217 = vpop.permute.xlu0 %216
        %vm218 = vcmask 1031168
        %v219 = vsel %vm218, %v215, %v217
        %v221 = vld [vmem:[%s1] sm:$0xff]
        %v222 = vld [vmem:[%s1 + $0x8] sm:$0xff]
        %v223 = vld [vmem:[%s2] sm:$0xff]
        %v224 = vld [vmem:[%s2 + $0x8] sm:$0xff]
        %226 = vset.pattern.permute.xlu0 0
        %227 = vperm.xlu0 %226, %v223
        %v228 = vpop.permute.xlu0 %227
        %231 = vset.pattern.permute.xlu0 0
        %232 = vperm.xlu0 %231, %v224
        %v233 = vpop.permute.xlu0 %232
        %vm235 = vcmask 195584
        %v237 = vsel %vm235, %v221, 0
        %v240 = vsel %vm235, %v222, 0
        %242 = vmatprep.subr.mxu0 0.0
        %243 = vmatpush1.msra.mxu0 %v203
        %244 = vmatprep.subr.mxu0 0.0
        %245 = vmatpush1.msra.mxu0 %v212
        %246 = vmatprep.subr.mxu0 0.0
        %247 = vmatpush1.msra.mxu0 %v219
        %248 = vmatprep.subr.mxu0 0.0
        %249 = vmatpush1.msra.mxu0 0.0
        %250 = vmatprep.subr.mxu0 0.0
        %251 = vmatpush1.msra.mxu0 0.0
        %252 = vmatprep.subr.mxu0 0.0
        %253 = vmatpush1.msra.mxu0 0.0
        %254 = vmatprep.subr.mxu0 0.0
        %255 = vmatpush1.msra.mxu0 0.0
        %256 = vmatprep.subr.mxu0 0.0
        %257 = vmatpush1.msra.mxu0 0.0
        %258 = vmatprep.subr.mxu0 0.0
        %259 = vmatpush1.msra.mxu0 0.0
        %260 = vmatprep.subr.mxu0 0.0
        %261 = vmatpush1.msra.mxu0 0.0
        %262 = vmatprep.subr.mxu0 0.0
        %263 = vmatpush1.msra.mxu0 0.0
        %264 = vmatprep.subr.mxu0 0.0
        %265 = vmatpush1.msra.mxu0 0.0
        %266 = vmatprep.subr.mxu0 0.0
        %267 = vmatpush1.msra.mxu0 0.0
        %268 = vmatprep.subr.mxu0 0.0
        %269 = vmatpush1.msra.mxu0 0.0
        %270 = vmatprep.subr.mxu0 0.0
        %271 = vmatpush1.msra.mxu0 0.0
        %272 = vmatprep.subr.mxu0 0.0
        %273 = vmatpush1.msra.mxu0 0.0
        %274 = vmatprep.subr.mxu0 0.0
        %275 = vmatpush1.msra.mxu0 0.0
        %276 = vmatprep.subr.mxu0 0.0
        %277 = vmatpush1.msra.mxu0 0.0
        %278 = vmatprep.subr.mxu0 0.0
        %279 = vmatpush1.msra.mxu0 0.0
        %280 = vmatprep.subr.mxu0 0.0
        %281 = vmatpush1.msra.mxu0 0.0
        %282 = vmatprep.subr.mxu0 0.0
        %283 = vmatpush1.msra.mxu0 0.0
        %284 = vmatprep.subr.mxu0 0.0
        %285 = vmatpush1.msra.mxu0 0.0
        %286 = vmatprep.subr.mxu0 0.0
        %287 = vmatpush1.msra.mxu0 0.0
        %288 = vmatprep.subr.mxu0 0.0
        %289 = vmatpush1.msra.mxu0 0.0
        %290 = vmatprep.subr.mxu0 0.0
        %291 = vmatpush1.msra.mxu0 0.0
        %292 = vmatprep.subr.mxu0 0.0
        %293 = vmatpush1.msra.mxu0 0.0
        %294 = vmatprep.subr.mxu0 0.0
        %295 = vmatpush1.msra.mxu0 0.0
        %296 = vmatprep.subr.mxu0 0.0
        %297 = vmatpush1.msra.mxu0 0.0
        %298 = vmatprep.subr.mxu0 0.0
        %299 = vmatpush1.msra.mxu0 0.0
        %300 = vmatprep.subr.mxu0 0.0
        %301 = vmatpush1.msra.mxu0 0.0
        %302 = vmatprep.subr.mxu0 0.0
        %303 = vmatpush1.msra.mxu0 0.0
        %304 = vmatprep.subr.mxu0 0.0
        %305 = vmatpush1.msra.mxu0 0.0
        %306 = vmatprep.mubr.f32.mxu0 0.0
        %307 = vmatmul.mubr.f32.gmra.mrb[0].mxu0 %v237
        %v308 = vpop.f32.mrb[0].mxu0
        %v309 = vadd.f32 %v228, %v308
        %v310 = vpop.f32.mrb[0].mxu0
        %311 = vmatprep.mubr.f32.mxu0 0.0
        %312 = vmatmul.mubr.f32.gmra.mrb[0].mxu0 %v240
        %v313 = vpop.f32.mrb[0].mxu0
        %v314 = vadd.f32 %v233, %v313
        %v315 = vpop.f32.mrb[0].mxu0
        %316 = vdwg.mxu0
        %317 = vst [vmem:[%s136] sm:$0xff] %v309
        %318 = vst [vmem:[%s136 + $0x8] sm:$0xff] %v314
        %s319 = sand.u32 %s81, 1
        %s320 = scalar_lea.sflag [#allocation5], %s319
        %s321 = sand.u32 %s81, 1
        %s322 = smul.addr %s321, 16
        %s323 = scalar_lea.vmem [#allocation4], %s322
        // Predicated region
        $region45: #{tpu_custom_call.1} parent=27 // pred_check
          %p324 = pneg %p91
        $region46: #{tpu_custom_call.1} parent=27 // pred_check_branch
          %326 = sbr.rel (%p324) target = $region48
        $region47: #{tpu_custom_call.1} parent=27 // pred_region
          %s328 = ssub.s32 256, 256
          %329 = vsyncadd %s320, %s328
          %s330 = smul.addr %s21, 2
          %s331 = sadd.s32 %s22, %s330
          %s332 = smul.addr %s331, 128
          %s333 = scalar_lea.hbm %s3, %s332
          %s334 = sshll.u32 %s323, 4
          %s335 = int_to_ptr.vmem [resolvable:$true] %s334
          %340 = dma.vmem_to_hbm [thread:$0]  %s335, 256, %s333, %s320, 128, 128, 8
        $region48: #{tpu_custom_call.1} parent=27 // pred_fallthru
          _
      $region28: #{tpu_custom_call.1} parent=5 // pred_fallthru
        _
      %p341 = scmp.le.s32.totalorder 2, %s12
      // Predicated region
      $region49: #{tpu_custom_call.1} parent=5 // pred_check
        %p342 = pneg %p341
      $region50: #{tpu_custom_call.1} parent=5 // pred_check_branch
        %344 = sbr.rel (%p342) target = $region52
      $region51: #{tpu_custom_call.1} parent=5 // pred_region
        %s345 = ssub.s32 %s12, 2
        // Predicated region
        $region53: #{tpu_custom_call.1} parent=51 // pred_check
          %p346 = pneg %p97
        $region54: #{tpu_custom_call.1} parent=51 // pred_check_branch
          %348 = sbr.rel (%p346) target = $region56
        $region55: #{tpu_custom_call.1} parent=51 // pred_region
          %s349 = sand.u32 %s82, 1
          %s350 = scalar_lea.sflag [#allocation5], %s349
          %s351 = sand.u32 %s82, 1
          %s352 = smul.addr %s351, 16
          %s353 = scalar_lea.vmem [#allocation4], %s352
          %354 = dma.done %s350, 256
        $region56: #{tpu_custom_call.1} parent=51 // pred_fallthru
          _
      $region52: #{tpu_custom_call.1} parent=5 // pred_fallthru
        _
    $region6: #{tpu_custom_call.1} parent=1 // loop_footer
      %s16 = sadd.s32 1, %s12
    $region7: #{tpu_custom_call.1} parent=1 // loop_footer_branch
      %11 = sbr.rel target = $region3
    $region8: #{tpu_custom_call.1} parent=1 // loop_exit
      _
    %355 = vsyncpa [#allocation5], 1
    %s356 = scalar_lea.sflag [#allocation5], 1
    %357 = vsyncpa %s356, 1
  %358 = vsyncmov [#allocation3]
  %s359 = vpop.sfrf %358
  %p360 = scmp.eq.s32.totalorder %s359, 0
  %p361 = pneg %p360
  %363 = shalt.err (%p361)
  %s364 = scalar_lea.sflag [#allocation3], 1
  %365 = vsyncmov %s364
  %s366 = vpop.sfrf %365
  %p367 = scmp.eq.s32.totalorder %s366, 0
  %p368 = pneg %p367
  %370 = shalt.err (%p368)

</llo_original>
